<compile_context>
chip_gen: v5e
topology: v5e:2x2
jax: 0.10.0
libtpu: 0.0.40
codegen_flags: <defaults>
</compile_context>

<pallas_src>
import jax
import jax.numpy as jnp
from jax.experimental import pallas as pl
from jax.experimental.pallas import tpu as pltpu


def _weightnet_kernel(x_ref,
                      w1_ref, b1_ref,
                      w2_ref, b2_ref,
                      w3_ref, b3_ref,
                      o_ref):
    # x_ref: (C_in, tile_cols) -- pixels on lanes, channels on sublanes.
    x = x_ref[...]

    h = jnp.dot(w1_ref[...], x, preferred_element_type=jnp.float32)
    h = jnp.maximum(h + b1_ref[...], 0.0)            # ReLU(conv1)

    h = jnp.dot(w2_ref[...], h, preferred_element_type=jnp.float32)
    h = jnp.maximum(h + b2_ref[...], 0.0)            # ReLU(conv2)

    h = jnp.dot(w3_ref[...], h, preferred_element_type=jnp.float32)
    h = jnp.maximum(h + b3_ref[...], 0.0)            # ReLU(conv3)

    o_ref[...] = h.astype(o_ref.dtype)


def weightnet_forward(localized_xyz, params, *, tile_cols=8192):
    """localized_xyz: NCHW float32 [B, C_in, H, W].  Returns [B, C_out, H, W]."""
    (w1, b1), (w2, b2), (w3, b3) = params
    B, C_in, H, W = localized_xyz.shape
    C_out = w3.shape[0]
    n_cols = H * W

    # Free reshape: NCHW is already channels-first / pixel-contiguous.
    x = localized_xyz.reshape(B, C_in, n_cols)

    # Pixel-tile: multiple of 128 lanes, no bigger than the (rounded-up) data.
    # No host-side padding: a ragged last block is handled by Pallas (out-of-
    # bounds lanes are never written back, and there is no cross-pixel
    # reduction so garbage pad lanes cannot contaminate valid outputs).
    tile_cols = max(128, (tile_cols // 128) * 128)
    tile_cols = min(tile_cols, pl.cdiv(n_cols, 128) * 128)
    grid = (B, pl.cdiv(n_cols, tile_cols))

    # Biases as columns so they broadcast over the pixel (lane) axis.
    b1c = b1.reshape(-1, 1)
    b2c = b2.reshape(-1, 1)
    b3c = b3.reshape(-1, 1)

    # Tiny weights/biases: resident in VMEM for the whole call (no per-step
    # DMA descriptors, no double-buffer slots).
    resident = pl.BlockSpec(memory_space=pltpu.MemorySpace.VMEM)

    out = pl.pallas_call(
        _weightnet_kernel,
        out_shape=jax.ShapeDtypeStruct((B, C_out, n_cols), localized_xyz.dtype),
        grid_spec=pltpu.PrefetchScalarGridSpec(
            num_scalar_prefetch=0,
            grid=grid,
            in_specs=[
                pl.BlockSpec((None, C_in, tile_cols), lambda b, j: (b, 0, j)),
                resident, resident,          # w1, b1
                resident, resident,          # w2, b2
                resident, resident,          # w3, b3
            ],
            out_specs=pl.BlockSpec((None, C_out, tile_cols),
                                   lambda b, j: (b, 0, j)),
        ),
        compiler_params=pltpu.CompilerParams(
            dimension_semantics=("parallel", "parallel"),
            # Tiny footprint (< 2.5 MiB/step double-buffered); 32 MiB is safe
            # on every generation incl. v7x's 64 MiB physical VMEM.
            vmem_limit_bytes=32 * 1024 * 1024,
        ),
    )(x, w1, b1c, w2, b2c, w3, b3c)

    return out.reshape(B, C_out, H, W)       # free reshape back to NCHW


def init_weightnet_params(key, in_channel, out_channel, hidden_unit=(8, 8)):
    """Uniform Kaiming-like fan-in init for the 1x1 convs.

    Weights are stored as (C_out, C_in) == PyTorch Conv2d weight[:, :, 0, 0],
    so the kernel computes W @ x directly on channels-first data."""
    dims = [in_channel, *hidden_unit, out_channel]
    params = []
    for i in range(len(dims) - 1):
        key, kw, kb = jax.random.split(key, 3)
        bound = 1.0 / jnp.sqrt(dims[i])
        w = jax.random.uniform(kw, (dims[i + 1], dims[i]),
                               minval=-bound, maxval=bound, dtype=jnp.float32)
        b = jax.random.uniform(kb, (dims[i + 1],),
                               minval=-bound, maxval=bound, dtype=jnp.float32)
        params.append((w, b))
    return params


def weightnet_reference(localized_xyz, params):
    """Pure-JAX reference matching the PyTorch 1x1-conv + ReLU stack."""
    x = localized_xyz
    for w, b in params:
        x = jnp.einsum('oc,bchw->bohw', w, x) + b.reshape(1, -1, 1, 1)
        x = jnp.maximum(x, 0.0)
    return x


if __name__ == "__main__":
    key = jax.random.PRNGKey(0)
    k_in, k_param = jax.random.split(key)

    # localized_xyz in PointPWC-Net is [B, 3, nsample, npoint]; small shapes here.
    B, C_in, nsample, npoint = 2, 3, 8, 16
    out_channel = 16
    localized_xyz = jax.random.normal(k_in, (B, C_in, nsample, npoint),
                                      dtype=jnp.float32)

    params = init_weightnet_params(k_param, C_in, out_channel, hidden_unit=(8, 8))

    out = weightnet_forward(localized_xyz, params)
    out = jax.block_until_ready(out)

    ref = weightnet_reference(localized_xyz, params)
    assert out.shape == (B, out_channel, nsample, npoint), out.shape
    assert jnp.allclose(out, ref, atol=1e-5, rtol=1e-5), \
        float(jnp.max(jnp.abs(out - ref)))

    print("KERNEL_OK")
</pallas_src>

<mosaic_0001>
module attributes {stable_mosaic.version = 11 : i64} {
  func.func @_weightnet_kernel(%arg0: i32, %arg1: i32, %arg2: memref<1x3x128xf32, #tpu.memory_space<vmem>>, %arg3: memref<8x3xf32, #tpu.memory_space<vmem>>, %arg4: memref<8x1xf32, #tpu.memory_space<vmem>>, %arg5: memref<8x8xf32, #tpu.memory_space<vmem>>, %arg6: memref<8x1xf32, #tpu.memory_space<vmem>>, %arg7: memref<16x8xf32, #tpu.memory_space<vmem>>, %arg8: memref<16x1xf32, #tpu.memory_space<vmem>>, %arg9: memref<1x16x128xf32, #tpu.memory_space<vmem>>) attributes {dimension_semantics = [#tpu.dimension_semantics<parallel>, #tpu.dimension_semantics<parallel>], iteration_bounds = array<i64: 2, 1>, scalar_prefetch = 0 : i64, scratch_operands = 0 : i64, tpu.core_type = #tpu.core_type<tc>, window_params = [{transform_indices = @transform_0, window_bounds = array<i64: 1, 3, 128>}, {pipeline_mode = #tpu.pipeline_mode<synchronous>, transform_indices = @transform_1, window_bounds = array<i64: 8, 3>}, {pipeline_mode = #tpu.pipeline_mode<synchronous>, transform_indices = @transform_2, window_bounds = array<i64: 8, 1>}, {pipeline_mode = #tpu.pipeline_mode<synchronous>, transform_indices = @transform_3, window_bounds = array<i64: 8, 8>}, {pipeline_mode = #tpu.pipeline_mode<synchronous>, transform_indices = @transform_4, window_bounds = array<i64: 8, 1>}, {pipeline_mode = #tpu.pipeline_mode<synchronous>, transform_indices = @transform_5, window_bounds = array<i64: 16, 8>}, {pipeline_mode = #tpu.pipeline_mode<synchronous>, transform_indices = @transform_6, window_bounds = array<i64: 16, 1>}, {transform_indices = @transform_7, window_bounds = array<i64: 1, 16, 128>}]} {
    %c0 = arith.constant 0 : index
    %c0_0 = arith.constant 0 : index
    %c0_1 = arith.constant 0 : index
    %0 = vector.load %arg2[%c0, %c0_0, %c0_1] : memref<1x3x128xf32, #tpu.memory_space<vmem>>, vector<1x3x128xf32>
    %1 = vector.shape_cast %0 : vector<1x3x128xf32> to vector<3x128xf32>
    %c0_2 = arith.constant 0 : index
    %c0_3 = arith.constant 0 : index
    %2 = vector.load %arg3[%c0_2, %c0_3] : memref<8x3xf32, #tpu.memory_space<vmem>>, vector<8x3xf32>
    %cst = arith.constant dense<0.000000e+00> : vector<8x128xf32>
    %3 = tpu.matmul %2, %1, %cst {dimension_numbers = #tpu.dot_dimension_numbers<[1], [0], [0], [1], [0, 0, 1, 1], [], []>} : vector<8x3xf32>, vector<3x128xf32>, vector<8x128xf32> -> vector<8x128xf32>
    %c0_4 = arith.constant 0 : index
    %c0_5 = arith.constant 0 : index
    %4 = vector.load %arg4[%c0_4, %c0_5] : memref<8x1xf32, #tpu.memory_space<vmem>>, vector<8x1xf32>
    %5 = vector.broadcast %4 : vector<8x1xf32> to vector<8x128xf32>
    %6 = arith.addf %3, %5 : vector<8x128xf32>
    %cst_6 = arith.constant 0.000000e+00 : f32
    %7 = vector.broadcast %cst_6 : f32 to vector<8x128xf32>
    %8 = arith.maximumf %6, %7 : vector<8x128xf32>
    %c0_7 = arith.constant 0 : index
    %c0_8 = arith.constant 0 : index
    %9 = vector.load %arg5[%c0_7, %c0_8] : memref<8x8xf32, #tpu.memory_space<vmem>>, vector<8x8xf32>
    %cst_9 = arith.constant dense<0.000000e+00> : vector<8x128xf32>
    %10 = tpu.matmul %9, %8, %cst_9 {dimension_numbers = #tpu.dot_dimension_numbers<[1], [0], [0], [1], [0, 0, 1, 1], [], []>} : vector<8x8xf32>, vector<8x128xf32>, vector<8x128xf32> -> vector<8x128xf32>
    %c0_10 = arith.constant 0 : index
    %c0_11 = arith.constant 0 : index
    %11 = vector.load %arg6[%c0_10, %c0_11] : memref<8x1xf32, #tpu.memory_space<vmem>>, vector<8x1xf32>
    %12 = vector.broadcast %11 : vector<8x1xf32> to vector<8x128xf32>
    %13 = arith.addf %10, %12 : vector<8x128xf32>
    %cst_12 = arith.constant 0.000000e+00 : f32
    %14 = vector.broadcast %cst_12 : f32 to vector<8x128xf32>
    %15 = arith.maximumf %13, %14 : vector<8x128xf32>
    %c0_13 = arith.constant 0 : index
    %c0_14 = arith.constant 0 : index
    %16 = vector.load %arg7[%c0_13, %c0_14] : memref<16x8xf32, #tpu.memory_space<vmem>>, vector<16x8xf32>
    %cst_15 = arith.constant dense<0.000000e+00> : vector<16x128xf32>
    %17 = tpu.matmul %16, %15, %cst_15 {dimension_numbers = #tpu.dot_dimension_numbers<[1], [0], [0], [1], [0, 0, 1, 1], [], []>} : vector<16x8xf32>, vector<8x128xf32>, vector<16x128xf32> -> vector<16x128xf32>
    %c0_16 = arith.constant 0 : index
    %c0_17 = arith.constant 0 : index
    %18 = vector.load %arg8[%c0_16, %c0_17] : memref<16x1xf32, #tpu.memory_space<vmem>>, vector<16x1xf32>
    %19 = vector.broadcast %18 : vector<16x1xf32> to vector<16x128xf32>
    %20 = arith.addf %17, %19 : vector<16x128xf32>
    %cst_18 = arith.constant 0.000000e+00 : f32
    %21 = vector.broadcast %cst_18 : f32 to vector<16x128xf32>
    %22 = arith.maximumf %20, %21 : vector<16x128xf32>
    %c0_19 = arith.constant 0 : index
    %c0_20 = arith.constant 0 : index
    %c0_21 = arith.constant 0 : index
    %23 = vector.load %arg9[%c0_19, %c0_20, %c0_21] : memref<1x16x128xf32, #tpu.memory_space<vmem>>, vector<1x16x128xf32>
    %24 = vector.shape_cast %23 : vector<1x16x128xf32> to vector<16x128xf32>
    %25 = vector.shape_cast %22 : vector<16x128xf32> to vector<1x16x128xf32>
    tpu.vector_store %arg9[%c0_19, %c0_20, %c0_21], %25 {strides = array<i32>} : memref<1x16x128xf32, #tpu.memory_space<vmem>>, vector<1x16x128xf32>,
    return
  }
  func.func @transform_0(%arg0: i32, %arg1: i32) -> (i32, i32, i32) {
    %c0_i32 = arith.constant 0 : i32
    %c0_i32_0 = arith.constant 0 : i32
    return %arg0, %c0_i32, %arg1 : i32, i32, i32
  }
  func.func @transform_1(%arg0: i32, %arg1: i32) -> (i32, i32) {
    %c0_i32 = arith.constant 0 : i32
    %c0_i32_0 = arith.constant 0 : i32
    %c0_i32_1 = arith.constant 0 : i32
    return %c0_i32, %c0_i32_0 : i32, i32
  }
  func.func @transform_2(%arg0: i32, %arg1: i32) -> (i32, i32) {
    %c0_i32 = arith.constant 0 : i32
    %c0_i32_0 = arith.constant 0 : i32
    %c0_i32_1 = arith.constant 0 : i32
    return %c0_i32, %c0_i32_0 : i32, i32
  }
  func.func @transform_3(%arg0: i32, %arg1: i32) -> (i32, i32) {
    %c0_i32 = arith.constant 0 : i32
    %c0_i32_0 = arith.constant 0 : i32
    %c0_i32_1 = arith.constant 0 : i32
    return %c0_i32, %c0_i32_0 : i32, i32
  }
  func.func @transform_4(%arg0: i32, %arg1: i32) -> (i32, i32) {
    %c0_i32 = arith.constant 0 : i32
    %c0_i32_0 = arith.constant 0 : i32
    %c0_i32_1 = arith.constant 0 : i32
    return %c0_i32, %c0_i32_0 : i32, i32
  }
  func.func @transform_5(%arg0: i32, %arg1: i32) -> (i32, i32) {
    %c0_i32 = arith.constant 0 : i32
    %c0_i32_0 = arith.constant 0 : i32
    %c0_i32_1 = arith.constant 0 : i32
    return %c0_i32, %c0_i32_0 : i32, i32
  }
  func.func @transform_6(%arg0: i32, %arg1: i32) -> (i32, i32) {
    %c0_i32 = arith.constant 0 : i32
    %c0_i32_0 = arith.constant 0 : i32
    %c0_i32_1 = arith.constant 0 : i32
    return %c0_i32, %c0_i32_0 : i32, i32
  }
  func.func @transform_7(%arg0: i32, %arg1: i32) -> (i32, i32, i32) {
    %c0_i32 = arith.constant 0 : i32
    %c0_i32_0 = arith.constant 0 : i32
    return %arg0, %c0_i32, %arg1 : i32, i32, i32
  }
}

</mosaic_0001>

<llo_original>
// kernel: tpu_custom_call.1
$region0: #{tpu_custom_call.1}
  #allocation0 [shape = 'u32[]', space=smem, size = 0x4, offset = 0x4, fixed_abs, tag = 'smem constant byte address 0x4 - core index']
  #allocation1 [shape = 'u32[72,128]{1,0:T(1,128)}', space=vmem, size = 0x9000, scoped, tag = 'internal scratch']
  %s0 = inlined_call_operand.vmem [shape: f32[2,3,128], index: 0, kind: input, shape index: {}]
  %s1 = inlined_call_operand.vmem [shape: f32[8,3], index: 1, kind: input, shape index: {}]
  %s2 = inlined_call_operand.vmem [shape: f32[8,1], index: 2, kind: input, shape index: {}]
  %s3 = inlined_call_operand.vmem [shape: f32[8,8], index: 3, kind: input, shape index: {}]
  %s4 = inlined_call_operand.vmem [shape: f32[8,1], index: 4, kind: input, shape index: {}]
  %s5 = inlined_call_operand.vmem [shape: f32[16,8], index: 5, kind: input, shape index: {}]
  %s6 = inlined_call_operand.vmem [shape: f32[16,1], index: 6, kind: input, shape index: {}]
  %s7 = inlined_call_operand.hbm [shape: f32[2,16,128], index: 7, kind: output, shape index: {}]
  %s8 = sld [smem:[#allocation0]]
  $region61: #{tpu_custom_call.1} parent=0
    _
  %s10 = ssub.s32 1, %s8
  %s11 = scalar_select 0, %s10, %s8
  $region1: #{tpu_custom_call.1} parent=0
    #allocation2 [shape = 'u8[16384]{0}', space=vmem, size = 0x4000, scoped, tag = 'output window, operand 0']
    #allocation3 [shape = 's32[2]{0}', space=sflag, size = 0x8, scoped, tag = 'scoped memory for tpu_custom_call.1']
    %12 = vsyncpa [#allocation3], 0
    %s13 = scalar_lea.sflag [#allocation3], 1
    %14 = vsyncpa %s13, 0
    loop: start=0, step=1, limit=4
    $region2: #{tpu_custom_call.1} parent=1 // loop_pre_header
      _
    $region3: #{tpu_custom_call.1} parent=1 // loop_header
      %s16 = sphi 0, %s20
      %p17 = scmp.ge.s32.totalorder %s16, 4
      %s23 = sphi 0, %s35
      %s24 = sphi 0, %s31
      %s25 = sphi 0, %s23
      %s26 = sphi 0, %s24
      %s27 = sphi 0, %s25
      %s28 = sphi 0, %s26
      %s40 = sphi 0, %s42
      %s43 = sphi 0, %s40
      %s44 = sphi 0, %s43
      %s60 = sphi 0, %s44
      %s64 = sphi 0, %s64
      %s66 = sphi 0, %s64
      %s67 = sphi 0, %s66
      %s81 = sphi 0, %s67
      %s85 = sphi 0, %s85
      %s87 = sphi 0, %s85
      %s88 = sphi 0, %s87
      %s102 = sphi 0, %s88
      %s106 = sphi 0, %s106
      %s108 = sphi 0, %s106
      %s109 = sphi 0, %s108
      %s123 = sphi 0, %s109
      %s127 = sphi 0, %s127
      %s129 = sphi 0, %s127
      %s130 = sphi 0, %s129
      %s144 = sphi 0, %s130
      %s148 = sphi 0, %s148
      %s150 = sphi 0, %s148
      %s151 = sphi 0, %s150
      %s165 = sphi 0, %s151
      %s169 = sphi 0, %s169
      %s171 = sphi 0, %s169
      %s172 = sphi 0, %s171
      %s186 = sphi 0, %s172
      %s194 = sphi 0, %s196
      %s197 = sphi 0, %s194
      %s198 = sphi 0, %s197
      %s214 = sphi 0, %s198
    $region4: #{tpu_custom_call.1} parent=1 // loop_header_branch
      %19 = sbr.rel (%p17) target = $region8
    $region5: #{tpu_custom_call.1} parent=1 // loop_body
      %s21 = ssub.s32 %s16, 1
      %s22 = ssub.s32 %s16, 2
      %s29 = sadd.s32 1, %s24
      %p30 = scmp.ge.s32.totalorder %s29, 1
      %s31 = scalar_select %p30, 0, %s29
      %s32 = sadd.s32 1, %s23
      %s33 = scalar_select %p30, %s32, %s23
      %p34 = scmp.ge.s32.totalorder %s33, 2
      %s35 = scalar_select %p34, 0, %s33
      %s36 = ssub.s32 %s23, %s35
      %s37 = ssub.s32 %s24, %s31
      %s38 = sor.u32 %s36, %s37
      %p39 = scmp.eq.s32.totalorder %s38, 0
      %s41 = sadd.s32 %s40, 1
      %s42 = scalar_select %p39, %s40, %s41
      %p45 = pneg %p39
      %p46 = scmp.eq.s32.totalorder %s16, 1
      %p47 = por %p45, %p46
      %p48 = scmp.ne.s32.totalorder %s40, %s43
      %p49 = scmp.eq.s32.totalorder %s16, 0
      %p50 = por %p48, %p49
      %p51 = scmp.ne.s32.totalorder %s40, %s43
      %p52 = scmp.eq.s32.totalorder %s21, 1
      %p53 = por %p51, %p52
      %p54 = scmp.ne.s32.totalorder %s43, %s44
      %p55 = scmp.eq.s32.totalorder %s21, 0
      %p56 = por %p54, %p55
      %p57 = scmp.ne.s32.totalorder %s43, %s44
      %p58 = scmp.eq.s32.totalorder %s22, 1
      %p59 = por %p57, %p58
      %p61 = scmp.ne.s32.totalorder %s44, %s60
      %p62 = scmp.eq.s32.totalorder %s22, 0
      %p63 = por %p61, %p62
      %s65 = sadd.s32 %s64, 1
      %p68 = scmp.eq.s32.totalorder %s16, 1
      %p69 = scmp.ne.s32.totalorder %s64, %s66
      %p70 = scmp.eq.s32.totalorder %s16, 0
      %p71 = por %p69, %p70
      %p72 = scmp.ne.s32.totalorder %s64, %s66
      %p73 = scmp.eq.s32.totalorder %s21, 1
      %p74 = por %p72, %p73
      %p75 = scmp.ne.s32.totalorder %s66, %s67
      %p76 = scmp.eq.s32.totalorder %s21, 0
      %p77 = por %p75, %p76
      %p78 = scmp.ne.s32.totalorder %s66, %s67
      %p79 = scmp.eq.s32.totalorder %s22, 1
      %p80 = por %p78, %p79
      %p82 = scmp.ne.s32.totalorder %s67, %s81
      %p83 = scmp.eq.s32.totalorder %s22, 0
      %p84 = por %p82, %p83
      %s86 = sadd.s32 %s85, 1
      %p89 = scmp.eq.s32.totalorder %s16, 1
      %p90 = scmp.ne.s32.totalorder %s85, %s87
      %p91 = scmp.eq.s32.totalorder %s16, 0
      %p92 = por %p90, %p91
      %p93 = scmp.ne.s32.totalorder %s85, %s87
      %p94 = scmp.eq.s32.totalorder %s21, 1
      %p95 = por %p93, %p94
      %p96 = scmp.ne.s32.totalorder %s87, %s88
      %p97 = scmp.eq.s32.totalorder %s21, 0
      %p98 = por %p96, %p97
      %p99 = scmp.ne.s32.totalorder %s87, %s88
      %p100 = scmp.eq.s32.totalorder %s22, 1
      %p101 = por %p99, %p100
      %p103 = scmp.ne.s32.totalorder %s88, %s102
      %p104 = scmp.eq.s32.totalorder %s22, 0
      %p105 = por %p103, %p104
      %s107 = sadd.s32 %s106, 1
      %p110 = scmp.eq.s32.totalorder %s16, 1
      %p111 = scmp.ne.s32.totalorder %s106, %s108
      %p112 = scmp.eq.s32.totalorder %s16, 0
      %p113 = por %p111, %p112
      %p114 = scmp.ne.s32.totalorder %s106, %s108
      %p115 = scmp.eq.s32.totalorder %s21, 1
      %p116 = por %p114, %p115
      %p117 = scmp.ne.s32.totalorder %s108, %s109
      %p118 = scmp.eq.s32.totalorder %s21, 0
      %p119 = por %p117, %p118
      %p120 = scmp.ne.s32.totalorder %s108, %s109
      %p121 = scmp.eq.s32.totalorder %s22, 1
      %p122 = por %p120, %p121
      %p124 = scmp.ne.s32.totalorder %s109, %s123
      %p125 = scmp.eq.s32.totalorder %s22, 0
      %p126 = por %p124, %p125
      %s128 = sadd.s32 %s127, 1
      %p131 = scmp.eq.s32.totalorder %s16, 1
      %p132 = scmp.ne.s32.totalorder %s127, %s129
      %p133 = scmp.eq.s32.totalorder %s16, 0
      %p134 = por %p132, %p133
      %p135 = scmp.ne.s32.totalorder %s127, %s129
      %p136 = scmp.eq.s32.totalorder %s21, 1
      %p137 = por %p135, %p136
      %p138 = scmp.ne.s32.totalorder %s129, %s130
      %p139 = scmp.eq.s32.totalorder %s21, 0
      %p140 = por %p138, %p139
      %p141 = scmp.ne.s32.totalorder %s129, %s130
      %p142 = scmp.eq.s32.totalorder %s22, 1
      %p143 = por %p141, %p142
      %p145 = scmp.ne.s32.totalorder %s130, %s144
      %p146 = scmp.eq.s32.totalorder %s22, 0
      %p147 = por %p145, %p146
      %s149 = sadd.s32 %s148, 1
      %p152 = scmp.eq.s32.totalorder %s16, 1
      %p153 = scmp.ne.s32.totalorder %s148, %s150
      %p154 = scmp.eq.s32.totalorder %s16, 0
      %p155 = por %p153, %p154
      %p156 = scmp.ne.s32.totalorder %s148, %s150
      %p157 = scmp.eq.s32.totalorder %s21, 1
      %p158 = por %p156, %p157
      %p159 = scmp.ne.s32.totalorder %s150, %s151
      %p160 = scmp.eq.s32.totalorder %s21, 0
      %p161 = por %p159, %p160
      %p162 = scmp.ne.s32.totalorder %s150, %s151
      %p163 = scmp.eq.s32.totalorder %s22, 1
      %p164 = por %p162, %p163
      %p166 = scmp.ne.s32.totalorder %s151, %s165
      %p167 = scmp.eq.s32.totalorder %s22, 0
      %p168 = por %p166, %p167
      %s170 = sadd.s32 %s169, 1
      %p173 = scmp.eq.s32.totalorder %s16, 1
      %p174 = scmp.ne.s32.totalorder %s169, %s171
      %p175 = scmp.eq.s32.totalorder %s16, 0
      %p176 = por %p174, %p175
      %p177 = scmp.ne.s32.totalorder %s169, %s171
      %p178 = scmp.eq.s32.totalorder %s21, 1
      %p179 = por %p177, %p178
      %p180 = scmp.ne.s32.totalorder %s171, %s172
      %p181 = scmp.eq.s32.totalorder %s21, 0
      %p182 = por %p180, %p181
      %p183 = scmp.ne.s32.totalorder %s171, %s172
      %p184 = scmp.eq.s32.totalorder %s22, 1
      %p185 = por %p183, %p184
      %p187 = scmp.ne.s32.totalorder %s172, %s186
      %p188 = scmp.eq.s32.totalorder %s22, 0
      %p189 = por %p187, %p188
      %s190 = ssub.s32 %s23, %s35
      %s191 = ssub.s32 %s24, %s31
      %s192 = sor.u32 %s190, %s191
      %p193 = scmp.eq.s32.totalorder %s192, 0
      %s195 = sadd.s32 %s194, 1
      %s196 = scalar_select %p193, %s194, %s195
      %p199 = pneg %p193
      %p200 = scmp.eq.s32.totalorder %s16, 1
      %p201 = por %p199, %p200
      %p202 = scmp.ne.s32.totalorder %s194, %s197
      %p203 = scmp.eq.s32.totalorder %s16, 0
      %p204 = por %p202, %p203
      %p205 = scmp.ne.s32.totalorder %s194, %s197
      %p206 = scmp.eq.s32.totalorder %s21, 1
      %p207 = por %p205, %p206
      %p208 = scmp.ne.s32.totalorder %s197, %s198
      %p209 = scmp.eq.s32.totalorder %s21, 0
      %p210 = por %p208, %p209
      %p211 = scmp.ne.s32.totalorder %s197, %s198
      %p212 = scmp.eq.s32.totalorder %s22, 1
      %p213 = por %p211, %p212
      %p215 = scmp.ne.s32.totalorder %s198, %s214
      %p216 = scmp.eq.s32.totalorder %s22, 0
      %p217 = por %p215, %p216
      %p218 = scmp.le.s32.totalorder 1, %s16
      %p219 = scmp.lt.s32.totalorder %s16, 3
      %p220 = pnand %p218, %p219
      %p221 = pneg %p220
      // Predicated region
      $region9: #{tpu_custom_call.1} parent=5 // pred_check
        _
      $region10: #{tpu_custom_call.1} parent=5 // pred_check_branch
        %223 = sbr.rel (%p220) target = $region12
      $region11: #{tpu_custom_call.1} parent=5 // pred_region
        %s224 = ssub.s32 %s16, 1
        // Predicated region
        $region13: #{tpu_custom_call.1} parent=11 // pred_check
          %p225 = pneg %p77
        $region14: #{tpu_custom_call.1} parent=11 // pred_check_branch
          %227 = sbr.rel (%p225) target = $region16
        $region15: #{tpu_custom_call.1} parent=11 // pred_region
          _
        $region16: #{tpu_custom_call.1} parent=11 // pred_fallthru
          _
        // Predicated region
        $region17: #{tpu_custom_call.1} parent=11 // pred_check
          %p228 = pneg %p98
        $region18: #{tpu_custom_call.1} parent=11 // pred_check_branch
          %230 = sbr.rel (%p228) target = $region20
        $region19: #{tpu_custom_call.1} parent=11 // pred_region
          _
        $region20: #{tpu_custom_call.1} parent=11 // pred_fallthru
          _
        // Predicated region
        $region21: #{tpu_custom_call.1} parent=11 // pred_check
          %p231 = pneg %p119
        $region22: #{tpu_custom_call.1} parent=11 // pred_check_branch
          %233 = sbr.rel (%p231) target = $region24
        $region23: #{tpu_custom_call.1} parent=11 // pred_region
          _
        $region24: #{tpu_custom_call.1} parent=11 // pred_fallthru
          _
        // Predicated region
        $region25: #{tpu_custom_call.1} parent=11 // pred_check
          %p234 = pneg %p140
        $region26: #{tpu_custom_call.1} parent=11 // pred_check_branch
          %236 = sbr.rel (%p234) target = $region28
        $region27: #{tpu_custom_call.1} parent=11 // pred_region
          _
        $region28: #{tpu_custom_call.1} parent=11 // pred_fallthru
          _
        // Predicated region
        $region29: #{tpu_custom_call.1} parent=11 // pred_check
          %p237 = pneg %p161
        $region30: #{tpu_custom_call.1} parent=11 // pred_check_branch
          %239 = sbr.rel (%p237) target = $region32
        $region31: #{tpu_custom_call.1} parent=11 // pred_region
          _
        $region32: #{tpu_custom_call.1} parent=11 // pred_fallthru
          _
        // Predicated region
        $region33: #{tpu_custom_call.1} parent=11 // pred_check
          %p240 = pneg %p182
        $region34: #{tpu_custom_call.1} parent=11 // pred_check_branch
          %242 = sbr.rel (%p240) target = $region36
        $region35: #{tpu_custom_call.1} parent=11 // pred_region
          _
        $region36: #{tpu_custom_call.1} parent=11 // pred_fallthru
          _
      $region12: #{tpu_custom_call.1} parent=5 // pred_fallthru
        _
      %p243 = scmp.lt.s32.totalorder %s16, 2
      // Predicated region
      $region37: #{tpu_custom_call.1} parent=5 // pred_check
        %p244 = pneg %p243
      $region38: #{tpu_custom_call.1} parent=5 // pred_check_branch
        %246 = sbr.rel (%p244) target = $region40
      $region39: #{tpu_custom_call.1} parent=5 // pred_region
        // Predicated region
        $region41: #{tpu_custom_call.1} parent=39 // pred_check
          %p247 = pneg %p50
        $region42: #{tpu_custom_call.1} parent=39 // pred_check_branch
          %249 = sbr.rel (%p247) target = $region44
        $region43: #{tpu_custom_call.1} parent=39 // pred_region
          %p250 = scmp.lt.s32.totalorder %s23, 1
          %s251 = scalar_select %p250, %s23, 1
          %p252 = scmp.lt.s32.totalorder %s24, 0
          %s253 = scalar_select %p252, %s24, 0
          %s254 = sadd.s32 %s253, %s251
          %s255 = smul.addr %s254, 4
          %s256 = scalar_lea.vmem %s0, %s255
        $region44: #{tpu_custom_call.1} parent=39 // pred_fallthru
          _
      $region40: #{tpu_custom_call.1} parent=5 // pred_fallthru
        _
      %p257 = scmp.le.s32.totalorder 1, %s16
      %p258 = scmp.lt.s32.totalorder %s16, 3
      %p259 = pnand %p257, %p258
      %p260 = pneg %p259
      // Predicated region
      $region45: #{tpu_custom_call.1} parent=5 // pred_check
        _
      $region46: #{tpu_custom_call.1} parent=5 // pred_check_branch
        %262 = sbr.rel (%p259) target = $region48
      $region47: #{tpu_custom_call.1} parent=5 // pred_region
        %s263 = ssub.s32 %s16, 1
        %p264 = scmp.lt.s32.totalorder %s25, 1
        %s265 = scalar_select %p264, %s25, 1
        %p266 = scmp.lt.s32.totalorder %s26, 0
        %s267 = scalar_select %p266, %s26, 0
        %s268 = sadd.s32 %s267, %s265
        %s269 = smul.addr %s268, 4
        %s270 = scalar_lea.vmem %s0, %s269
        %p271 = pneg %p56
        %p272 = pneg %p53
        %p273 = pneg %p77
        %p274 = pneg %p74
        %p275 = pneg %p98
        %p276 = pneg %p95
        %p277 = pneg %p119
        %p278 = pneg %p116
        %p279 = pneg %p140
        %p280 = pneg %p137
        %p281 = pneg %p161
        %p282 = pneg %p158
        %p283 = pneg %p182
        %p284 = pneg %p179
        %p285 = pneg %p210
        %p286 = pneg %p207
        %s287 = sand.u32 %s197, 1
        %s288 = scalar_lea.sflag [#allocation3], %s287
        %s289 = sand.u32 %s197, 1
        %s290 = smul.addr %s289, 16
        %s291 = scalar_lea.vmem [#allocation2], %s290
        %p292 = scmp.lt.s32.totalorder %s25, 1
        %s293 = scalar_select %p292, %s25, 1
        %p294 = scmp.lt.s32.totalorder %s26, 0
        %s295 = scalar_select %p294, %s26, 0
        %s296 = sadd.s32 %s295, %s293
        %s297 = smul.addr %s296, 4
        %s298 = scalar_lea.vmem %s0, %s297
        %v299 = vld [vmem:[%s298] sm:$0x7]
        %v300 = vld [vmem:[%s1] sm:$0xff]
        %v301 = vld [vmem:[%s2] sm:$0xff]
        %303 = vset.pattern.permute.xlu0 0
        %304 = vperm.xlu0 %303, %v301
        %v305 = vpop.permute.xlu0 %304
        %vm307 = vcmask 23552
        %v309 = vsel %vm307, %v300, 0
        %vm311 = vcmask 1042432
        %v313 = vsel %vm311, %v299, 0
        %315 = vmatpush.msra.mxu0 0.0
        %316 = vmatpush.msra.mxu0 0.0
        %317 = vmatpush.msra.mxu0 0.0
        %318 = vmatpush.msra.mxu0 0.0
        %319 = vmatpush.msra.mxu0 0.0
        %320 = vmatpush.msra.mxu0 0.0
        %321 = vmatpush.msra.mxu0 0.0
        %322 = vmatpush.msra.mxu0 0.0
        %323 = vmatpush.msra.mxu0 0.0
        %324 = vmatpush.msra.mxu0 0.0
        %325 = vmatpush.msra.mxu0 0.0
        %326 = vmatpush.msra.mxu0 0.0
        %327 = vmatpush.msra.mxu0 0.0
        %328 = vmatpush.msra.mxu0 0.0
        %329 = vmatpush.msra.mxu0 0.0
        %330 = vmatpush.msra.mxu0 %v313
        %331 = vmatmul.f32.gmra.mxu0 %v309
        %v332 = vpop.f32.mrf.mxu0
        %v333 = vadd.f32 %v305, %v332
        %334 = vdwg.mxu0
        %v335 = vmax.f32 %v333, 0.0
        %v336 = vld [vmem:[%s3] sm:$0xff]
        %v337 = vld [vmem:[%s4] sm:$0xff]
        %339 = vset.pattern.permute.xlu0 0
        %340 = vperm.xlu0 %339, %v337
        %v341 = vpop.permute.xlu0 %340
        %vm343 = vcmask 64512
        %v345 = vsel %vm343, %v336, 0
        %347 = vmatpush.msra.mxu0 0.0
        %348 = vmatpush.msra.mxu0 0.0
        %349 = vmatpush.msra.mxu0 0.0
        %350 = vmatpush.msra.mxu0 0.0
        %351 = vmatpush.msra.mxu0 0.0
        %352 = vmatpush.msra.mxu0 0.0
        %353 = vmatpush.msra.mxu0 0.0
        %354 = vmatpush.msra.mxu0 0.0
        %355 = vmatpush.msra.mxu0 0.0
        %356 = vmatpush.msra.mxu0 0.0
        %357 = vmatpush.msra.mxu0 0.0
        %358 = vmatpush.msra.mxu0 0.0
        %359 = vmatpush.msra.mxu0 0.0
        %360 = vmatpush.msra.mxu0 0.0
        %361 = vmatpush.msra.mxu0 0.0
        %362 = vmatpush.msra.mxu0 %v335
        %363 = vmatmul.f32.gmra.mxu0 %v345
        %v364 = vpop.f32.mrf.mxu0
        %v365 = vadd.f32 %v341, %v364
        %366 = vdwg.mxu0
        %v367 = vmax.f32 %v365, 0.0
        %v368 = vld [vmem:[%s5] sm:$0xff]
        %v369 = vld [vmem:[%s5 + $0x8] sm:$0xff]
        %v370 = vld [vmem:[%s6] sm:$0xff]
        %v371 = vld [vmem:[%s6 + $0x8] sm:$0xff]
        %373 = vset.pattern.permute.xlu0 0
        %374 = vperm.xlu0 %373, %v370
        %v375 = vpop.permute.xlu0 %374
        %378 = vset.pattern.permute.xlu0 0
        %379 = vperm.xlu0 %378, %v371
        %v380 = vpop.permute.xlu0 %379
        %v383 = vsel %vm343, %v368, 0
        %v386 = vsel %vm343, %v369, 0
        %388 = vmatpush.msra.mxu0 0.0
        %389 = vmatpush.msra.mxu0 0.0
        %390 = vmatpush.msra.mxu0 0.0
        %391 = vmatpush.msra.mxu0 0.0
        %392 = vmatpush.msra.mxu0 0.0
        %393 = vmatpush.msra.mxu0 0.0
        %394 = vmatpush.msra.mxu0 0.0
        %395 = vmatpush.msra.mxu0 0.0
        %396 = vmatpush.msra.mxu0 0.0
        %397 = vmatpush.msra.mxu0 0.0
        %398 = vmatpush.msra.mxu0 0.0
        %399 = vmatpush.msra.mxu0 0.0
        %400 = vmatpush.msra.mxu0 0.0
        %401 = vmatpush.msra.mxu0 0.0
        %402 = vmatpush.msra.mxu0 0.0
        %403 = vmatpush.msra.mxu0 %v367
        %404 = vmatmul.f32.gmra.mxu0 %v383
        %v405 = vpop.f32.mrf.mxu0
        %v406 = vadd.f32 %v375, %v405
        %407 = vmatmul.f32.gmra.mxu0 %v386
        %v408 = vpop.f32.mrf.mxu0
        %v409 = vadd.f32 %v380, %v408
        %410 = vdwg.mxu0
        %v411 = vmax.f32 %v406, 0.0
        %v412 = vmax.f32 %v409, 0.0
        %413 = vst [vmem:[%s291] sm:$0xff] %v411
        %414 = vst [vmem:[%s291 + $0x8] sm:$0xff] %v412
        %s415 = sand.u32 %s197, 1
        %s416 = scalar_lea.sflag [#allocation3], %s415
        %s417 = sand.u32 %s197, 1
        %s418 = smul.addr %s417, 16
        %s419 = scalar_lea.vmem [#allocation2], %s418
        // Predicated region
        $region49: #{tpu_custom_call.1} parent=47 // pred_check
          %p420 = pneg %p207
        $region50: #{tpu_custom_call.1} parent=47 // pred_check_branch
          %422 = sbr.rel (%p420) target = $region52
        $region51: #{tpu_custom_call.1} parent=47 // pred_region
          %424 = vsyncadd %s416, 0
          %s425 = smul.addr %s25, 2
          %s426 = sadd.s32 %s26, %s425
          %s427 = smul.addr %s426, 8
          %s428 = scalar_lea.hbm %s7, %s427
          %s429 = sshll.u32 %s419, 4
          %s430 = int_to_ptr.vmem [resolvable:$true] %s429
          %s431 = sshll.u32 %s428, 4
          %s432 = int_to_ptr.hbm [resolvable:$true] %s431
          %437 = dma.vmem_to_hbm [thread:$0]  %s430, 256, %s432, %s416, 128, 128, 8
        $region52: #{tpu_custom_call.1} parent=47 // pred_fallthru
          _
      $region48: #{tpu_custom_call.1} parent=5 // pred_fallthru
        _
      %p438 = scmp.le.s32.totalorder 2, %s16
      // Predicated region
      $region53: #{tpu_custom_call.1} parent=5 // pred_check
        %p439 = pneg %p438
      $region54: #{tpu_custom_call.1} parent=5 // pred_check_branch
        %441 = sbr.rel (%p439) target = $region56
      $region55: #{tpu_custom_call.1} parent=5 // pred_region
        %s442 = ssub.s32 %s16, 2
        // Predicated region
        $region57: #{tpu_custom_call.1} parent=55 // pred_check
          %p443 = pneg %p213
        $region58: #{tpu_custom_call.1} parent=55 // pred_check_branch
          %445 = sbr.rel (%p443) target = $region60
        $region59: #{tpu_custom_call.1} parent=55 // pred_region
          %s446 = sand.u32 %s198, 1
          %s447 = scalar_lea.sflag [#allocation3], %s446
          %s448 = sand.u32 %s198, 1
          %s449 = smul.addr %s448, 16
          %s450 = scalar_lea.vmem [#allocation2], %s449
          %452 = dma.done %s447, 256
        $region60: #{tpu_custom_call.1} parent=55 // pred_fallthru
          _
      $region56: #{tpu_custom_call.1} parent=5 // pred_fallthru
        _
    $region6: #{tpu_custom_call.1} parent=1 // loop_footer
      %s20 = sadd.s32 1, %s16
    $region7: #{tpu_custom_call.1} parent=1 // loop_footer_branch
      %15 = sbr.rel target = $region3
    $region8: #{tpu_custom_call.1} parent=1 // loop_exit
      _
    %453 = vsyncpa [#allocation3], 1
    %s454 = scalar_lea.sflag [#allocation3], 1
    %455 = vsyncpa %s454, 1

</llo_original>
